<compile_context>
chip_gen: v7x
topology: tpu7x:2x2x1
jax: 0.10.0
libtpu: 0.0.40
codegen_flags: <defaults>
</compile_context>

<pallas_src>
from typing import NamedTuple

import jax
import jax.numpy as jnp
from jax.experimental import pallas as pl
from jax.experimental.pallas import tpu as pltpu


def _round_up(x, m):
    return (x + m - 1) // m * m


def _vmem_capacity_bytes():
    try:
        return int(pltpu.get_tpu_info().vmem_capacity_bytes)
    except Exception:
        return 64 * 1024 * 1024  # conservative fallback: v7x per-TensorCore VMEM


def _resident_spec(block_shape):
    # Constant index_map -> operand stays VMEM-resident across the whole grid;
    # single-buffer it so the pipeline does not allocate a pointless second copy.
    idx = lambda i: (0, 0)
    try:
        return pl.BlockSpec(block_shape, idx, pipeline_mode=pl.Buffered(1))
    except (TypeError, AttributeError):  # older JAX without pipeline_mode/Buffered
        return pl.BlockSpec(block_shape, idx)


def _choose_tile_b(B, tile_b, per_row_bytes, resident_bytes, vmem_budget):
    tb = max(8, min(int(tile_b), _round_up(B, 8)))
    if B > 8:
        # Ensure >= 2 grid steps so v7x's second TensorCore gets work to shard.
        tb = min(tb, _round_up((B + 1) // 2, 8))
    avail = vmem_budget - resident_bytes
    if avail > 0:
        tb_fit = (avail // (2 * per_row_bytes)) // 8 * 8  # 2x = double-buffered tiles
        if tb_fit >= 8:
            tb = min(tb, tb_fit)
    return max(8, _round_up(tb, 8))


# -------------------------------- kernels -----------------------------------


def _fixed_fc_kernel_target(x_ref, wf_ref, th_ref, wt_ref, bt_ref,
                            spike_ref, yt_ref):
    # f_fc on the MXU: bf16 operands, f32 accumulation (x cast in-kernel).
    h = jnp.dot(x_ref[...].astype(wf_ref.dtype), wf_ref[...],
                preferred_element_type=jnp.float32)
    # LIF single step from rest, bias folded into the threshold:
    #   (h + b)/tau >= v_th  <=>  h >= tau*v_th - b  (== th_ref)
    spike = (h >= th_ref[...]).astype(spike_ref.dtype)  # bf16 {0,1}, exact
    spike_ref[...] = spike
    # t_fc on spikes: spike already bf16, feed it straight into the MXU.
    yt_ref[...] = jnp.dot(spike, wt_ref[...],
                          preferred_element_type=jnp.float32) + bt_ref[...]


def _fixed_fc_kernel_no_target(x_ref, wf_ref, th_ref, spike_ref):
    h = jnp.dot(x_ref[...].astype(wf_ref.dtype), wf_ref[...],
                preferred_element_type=jnp.float32)
    spike_ref[...] = (h >= th_ref[...]).astype(spike_ref.dtype)


# ----------------------------- parameter prep -------------------------------


class FixedFCParams(NamedTuple):
    wf: jax.Array      # (in_size, out_p)  compute dtype, lane-padded, zero pad
    thresh: jax.Array  # (1, out_p) f32    = tau*v_threshold - b_f (pad = tau*v_th)
    wt: jax.Array      # (out_p, lbl_p)    compute dtype, zero pad
    bt: jax.Array      # (1, lbl_p) f32
    out_size: int
    label_size: int


def prepare_fixed_fc_params(wf, bf, wt, bt, *, tau, v_threshold=1.0,
                            compute_dtype=jnp.bfloat16):
    """One-time pad/cast of the FixedFCBlock parameters (hoisted out of forward).

    wf: (input_size, output_size) == f_fc.weight.T      bf: (output_size,)
    wt: (output_size, label_size) == t_fc.weight.T      bt: (label_size,)
    """
    in_size, out_size = wf.shape
    label_size = wt.shape[1]
    out_p = _round_up(out_size, 128)
    lbl_p = _round_up(label_size, 128)
    cdt = jnp.dtype(compute_dtype)

    wf_p = jnp.zeros((in_size, out_p), cdt).at[:, :out_size].set(wf.astype(cdt))
    # Bias folded into the firing threshold (padded lanes keep tau*v_th -> no spike).
    thr = jnp.full((1, out_p), float(tau) * float(v_threshold), jnp.float32)
    thr = thr.at[0, :out_size].add(-bf.astype(jnp.float32))
    wt_p = jnp.zeros((out_p, lbl_p), cdt).at[:out_size, :label_size].set(wt.astype(cdt))
    bt_p = jnp.zeros((1, lbl_p), jnp.float32).at[0, :label_size].set(
        bt.astype(jnp.float32))
    return FixedFCParams(wf=wf_p, thresh=thr, wt=wt_p, bt=bt_p,
                         out_size=out_size, label_size=label_size)


# --------------------------------- forward ----------------------------------


def fixed_fc_block_forward(x, params: FixedFCParams, *, target=False,
                           tile_b=512, keep_padded=False):
    """Fused FixedFCBlock forward.

    x: (B, input_size), any float dtype (cast to bf16 inside the kernel).
    Returns (spike [bf16, values in {0,1}], y_t [f32] if target else None).
    With keep_padded=True the lane-padded (…, out_p)/(…, lbl_p) arrays are
    returned directly (preferred when chaining into another padded layer).
    """
    B, in_size = x.shape
    assert params.wf.shape[0] == in_size
    out_p = params.wf.shape[1]
    lbl_p = params.wt.shape[1]

    # ---- VMEM budget (generation-aware) and batch tile ----
    wt_itm = jnp.dtype(params.wf.dtype).itemsize
    per_row = in_size * jnp.dtype(x.dtype).itemsize + out_p * 2  # x in + spike out (bf16)
    resident = in_size * out_p * wt_itm + out_p * 4
    if target:
        per_row += lbl_p * 4
        resident += out_p * lbl_p * wt_itm + lbl_p * 4

    cap = int(_vmem_capacity_bytes() * 0.85)   # ~54 MiB on v7x, ~109 MiB on v5e/v6e
    tb = _choose_tile_b(B, tile_b, per_row, resident, cap - (4 << 20))
    grid = (pl.cdiv(B, tb),)                   # partial last block clipped by Pallas
    vmem_limit = int(min(cap, max(resident + 2 * tb * per_row + (4 << 20), 16 << 20)))

    cparams = pltpu.CompilerParams(
        dimension_semantics=("parallel",),     # shard batch tiles across v7x's 2 TCs
        vmem_limit_bytes=vmem_limit,
    )

    x_spec = pl.BlockSpec((tb, in_size), lambda i: (i, 0))   # full K extent, no pad
    wf_spec = _resident_spec((in_size, out_p))
    th_spec = _resident_spec((1, out_p))
    spike_spec = pl.BlockSpec((tb, out_p), lambda i: (i, 0))

    if target:
        wt_spec = _resident_spec((out_p, lbl_p))
        bt_spec = _resident_spec((1, lbl_p))
        spike, y_t = pl.pallas_call(
            _fixed_fc_kernel_target,
            grid=grid,
            in_specs=[x_spec, wf_spec, th_spec, wt_spec, bt_spec],
            out_specs=(spike_spec, pl.BlockSpec((tb, lbl_p), lambda i: (i, 0))),
            out_shape=(jax.ShapeDtypeStruct((B, out_p), jnp.bfloat16),
                       jax.ShapeDtypeStruct((B, lbl_p), jnp.float32)),
            compiler_params=cparams,
        )(x, params.wf, params.thresh, params.wt, params.bt)
        if keep_padded:
            return spike, y_t
        return spike[:, :params.out_size], y_t[:, :params.label_size]

    spike = pl.pallas_call(
        _fixed_fc_kernel_no_target,
        grid=grid,
        in_specs=[x_spec, wf_spec, th_spec],
        out_specs=spike_spec,
        out_shape=jax.ShapeDtypeStruct((B, out_p), jnp.bfloat16),
        compiler_params=cparams,
    )(x, params.wf, params.thresh)
    if keep_padded:
        return spike, None
    return spike[:, :params.out_size], None


# ------------------------------ demo / checks -------------------------------


def init_params(key, input_size, output_size, label_size, lc_ampl=0.5):
    """Deterministic synthetic parameter init mirroring the module shapes."""
    k1, k2, k3, k4 = jax.random.split(key, 4)
    # f_fc: PyTorch Linear default-style uniform(-1/sqrt(in), 1/sqrt(in)).
    bound_f = 1.0 / jnp.sqrt(float(input_size))
    wf = jax.random.uniform(k1, (input_size, output_size), jnp.float32,
                            -bound_f, bound_f)          # = weight.T
    bf = jax.random.uniform(k2, (output_size,), jnp.float32, -bound_f, bound_f)
    # t_fc: set_t_layer_parameters -> uniform(-stdv, stdv), stdv = lc_ampl/sqrt(out)
    stdv = lc_ampl / jnp.sqrt(float(output_size))
    wt = jax.random.uniform(k3, (output_size, label_size), jnp.float32,
                            -stdv, stdv)                # = weight.T
    bt = jax.random.uniform(k4, (label_size,), jnp.float32, -stdv, stdv)
    return wf, bf, wt, bt


if __name__ == "__main__":
    input_size, output_size, label_size = 32, 64, 16
    batch = 8
    tau = 2.0
    v_threshold = 1.0

    key = jax.random.PRNGKey(0)
    kx, kp = jax.random.split(key)
    x = jax.random.normal(kx, (batch, input_size), jnp.float32)
    wf, bf, wt, bt = init_params(kp, input_size, output_size, label_size)

    # One-time parameter prep (padding/cast hoisted out of the forward path).
    params = prepare_fixed_fc_params(wf, bf, wt, bt, tau=tau,
                                     v_threshold=v_threshold)

    spike, y_t = fixed_fc_block_forward(x, params, target=True)
    jax.block_until_ready((spike, y_t))
    assert spike.shape == (batch, output_size)
    assert y_t.shape == (batch, label_size)

    # Pure-JAX reference with the same bf16-operand / f32-accumulation quantization
    # and the same bias-folded threshold form as the kernel.
    bf16 = jnp.bfloat16
    h_ref = jnp.dot(x.astype(bf16), wf.astype(bf16),
                    preferred_element_type=jnp.float32)
    thr_ref = jnp.float32(tau * v_threshold) - bf.astype(jnp.float32)
    spike_ref = (h_ref >= thr_ref).astype(jnp.float32)
    yt_ref = jnp.dot(spike_ref.astype(bf16), wt.astype(bf16),
                     preferred_element_type=jnp.float32) + bt

    assert jnp.allclose(spike.astype(jnp.float32), spike_ref, atol=1e-5)
    assert jnp.allclose(y_t, yt_ref, atol=1e-3)

    # target=False path: no second matmul, no y_t output, matches the module.
    spike2, none_yt = fixed_fc_block_forward(x, params, target=False)
    jax.block_until_ready(spike2)
    assert none_yt is None
    assert jnp.allclose(spike2.astype(jnp.float32), spike_ref, atol=1e-5)

    print("KERNEL_OK")
</pallas_src>

<mosaic_0001>
module attributes {stable_mosaic.version = 11 : i64} {
  func.func @_fixed_fc_kernel_target(%arg0: i32, %arg1: memref<8x32xf32, #tpu.memory_space<vmem>>, %arg2: memref<32x128xbf16, #tpu.memory_space<vmem>>, %arg3: memref<1x128xf32, #tpu.memory_space<vmem>>, %arg4: memref<128x128xbf16, #tpu.memory_space<vmem>>, %arg5: memref<1x128xf32, #tpu.memory_space<vmem>>, %arg6: memref<8x128xbf16, #tpu.memory_space<vmem>>, %arg7: memref<8x128xf32, #tpu.memory_space<vmem>>) attributes {dimension_semantics = [#tpu.dimension_semantics<parallel>], iteration_bounds = array<i64: 1>, scalar_prefetch = 0 : i64, scratch_operands = 0 : i64, tpu.core_type = #tpu.core_type<tc>, window_params = [{transform_indices = @transform_0, window_bounds = array<i64: 8, 32>}, {pipeline_mode = #tpu.pipeline_mode<synchronous>, transform_indices = @transform_1, window_bounds = array<i64: 32, 128>}, {pipeline_mode = #tpu.pipeline_mode<synchronous>, transform_indices = @transform_2, window_bounds = array<i64: 1, 128>}, {pipeline_mode = #tpu.pipeline_mode<synchronous>, transform_indices = @transform_3, window_bounds = array<i64: 128, 128>}, {pipeline_mode = #tpu.pipeline_mode<synchronous>, transform_indices = @transform_4, window_bounds = array<i64: 1, 128>}, {transform_indices = @transform_5, window_bounds = array<i64: 8, 128>}, {transform_indices = @transform_6, window_bounds = array<i64: 8, 128>}]} {
    %c0 = arith.constant 0 : index
    %c0_0 = arith.constant 0 : index
    %0 = vector.load %arg1[%c0, %c0_0] : memref<8x32xf32, #tpu.memory_space<vmem>>, vector<8x32xf32>
    %1 = arith.truncf %0 : vector<8x32xf32> to vector<8x32xbf16>
    %c0_1 = arith.constant 0 : index
    %c0_2 = arith.constant 0 : index
    %2 = vector.load %arg2[%c0_1, %c0_2] : memref<32x128xbf16, #tpu.memory_space<vmem>>, vector<32x128xbf16>
    %cst = arith.constant dense<0.000000e+00> : vector<8x128xf32>
    %3 = tpu.matmul %1, %2, %cst {dimension_numbers = #tpu.dot_dimension_numbers<[1], [0], [0], [1], [0, 0, 1, 1], [], []>} : vector<8x32xbf16>, vector<32x128xbf16>, vector<8x128xf32> -> vector<8x128xf32>
    %c0_3 = arith.constant 0 : index
    %c0_4 = arith.constant 0 : index
    %4 = vector.load %arg3[%c0_3, %c0_4] : memref<1x128xf32, #tpu.memory_space<vmem>>, vector<1x128xf32>
    %5 = vector.broadcast %4 : vector<1x128xf32> to vector<8x128xf32>
    %6 = arith.cmpf oge, %3, %5 : vector<8x128xf32>
    %7 = arith.extui %6 : vector<8x128xi1> to vector<8x128xi32>
    %8 = arith.sitofp %7 : vector<8x128xi32> to vector<8x128xf32>
    %9 = arith.truncf %8 : vector<8x128xf32> to vector<8x128xbf16>
    %c0_5 = arith.constant 0 : index
    %c0_6 = arith.constant 0 : index
    %10 = vector.load %arg6[%c0_5, %c0_6] : memref<8x128xbf16, #tpu.memory_space<vmem>>, vector<8x128xbf16>
    tpu.vector_store %arg6[%c0_5, %c0_6], %9 {strides = array<i32>} : memref<8x128xbf16, #tpu.memory_space<vmem>>, vector<8x128xbf16>,
    %c0_7 = arith.constant 0 : index
    %c0_8 = arith.constant 0 : index
    %11 = vector.load %arg4[%c0_7, %c0_8] : memref<128x128xbf16, #tpu.memory_space<vmem>>, vector<128x128xbf16>
    %cst_9 = arith.constant dense<0.000000e+00> : vector<8x128xf32>
    %12 = tpu.matmul %9, %11, %cst_9 {dimension_numbers = #tpu.dot_dimension_numbers<[1], [0], [0], [1], [0, 0, 1, 1], [], []>} : vector<8x128xbf16>, vector<128x128xbf16>, vector<8x128xf32> -> vector<8x128xf32>
    %c0_10 = arith.constant 0 : index
    %c0_11 = arith.constant 0 : index
    %13 = vector.load %arg5[%c0_10, %c0_11] : memref<1x128xf32, #tpu.memory_space<vmem>>, vector<1x128xf32>
    %14 = vector.broadcast %13 : vector<1x128xf32> to vector<8x128xf32>
    %15 = arith.addf %12, %14 : vector<8x128xf32>
    %c0_12 = arith.constant 0 : index
    %c0_13 = arith.constant 0 : index
    %16 = vector.load %arg7[%c0_12, %c0_13] : memref<8x128xf32, #tpu.memory_space<vmem>>, vector<8x128xf32>
    tpu.vector_store %arg7[%c0_12, %c0_13], %15 {strides = array<i32>} : memref<8x128xf32, #tpu.memory_space<vmem>>, vector<8x128xf32>,
    return
  }
  func.func @transform_0(%arg0: i32) -> (i32, i32) {
    %c0_i32 = arith.constant 0 : i32
    %c0_i32_0 = arith.constant 0 : i32
    return %arg0, %c0_i32 : i32, i32
  }
  func.func @transform_1(%arg0: i32) -> (i32, i32) {
    %c0_i32 = arith.constant 0 : i32
    %c0_i32_0 = arith.constant 0 : i32
    %c0_i32_1 = arith.constant 0 : i32
    return %c0_i32, %c0_i32_0 : i32, i32
  }
  func.func @transform_2(%arg0: i32) -> (i32, i32) {
    %c0_i32 = arith.constant 0 : i32
    %c0_i32_0 = arith.constant 0 : i32
    %c0_i32_1 = arith.constant 0 : i32
    return %c0_i32, %c0_i32_0 : i32, i32
  }
  func.func @transform_3(%arg0: i32) -> (i32, i32) {
    %c0_i32 = arith.constant 0 : i32
    %c0_i32_0 = arith.constant 0 : i32
    %c0_i32_1 = arith.constant 0 : i32
    return %c0_i32, %c0_i32_0 : i32, i32
  }
  func.func @transform_4(%arg0: i32) -> (i32, i32) {
    %c0_i32 = arith.constant 0 : i32
    %c0_i32_0 = arith.constant 0 : i32
    %c0_i32_1 = arith.constant 0 : i32
    return %c0_i32, %c0_i32_0 : i32, i32
  }
  func.func @transform_5(%arg0: i32) -> (i32, i32) {
    %c0_i32 = arith.constant 0 : i32
    %c0_i32_0 = arith.constant 0 : i32
    return %arg0, %c0_i32 : i32, i32
  }
  func.func @transform_6(%arg0: i32) -> (i32, i32) {
    %c0_i32 = arith.constant 0 : i32
    %c0_i32_0 = arith.constant 0 : i32
    return %arg0, %c0_i32 : i32, i32
  }
}

</mosaic_0001>

<llo_original>
// kernel: tpu_custom_call.1
$region0: #{tpu_custom_call.1}
  #allocation0 [shape = 'u32[]', space=smem, size = 0x4, offset = 0x4, fixed_abs, tag = 'smem constant byte address 0x4 - core index']
  #allocation1 [shape = 'u32[144,128]{1,0:T(1,128)}', space=vmem, size = 0x12000, scoped, tag = 'internal scratch']
  %s0 = inlined_call_operand.hbm [shape: f32[8,32], index: 0, kind: input, shape index: {}]
  %s1 = inlined_call_operand.hbm [shape: bf16[32,128], index: 1, kind: input, shape index: {}]
  %s2 = inlined_call_operand.vmem [shape: f32[1,128], index: 2, kind: input, shape index: {}]
  %s3 = inlined_call_operand.hbm [shape: bf16[128,128], index: 3, kind: input, shape index: {}]
  %s4 = inlined_call_operand.vmem [shape: f32[1,128], index: 4, kind: input, shape index: {}]
  %s5 = inlined_call_operand.hbm [shape: bf16[8,128], index: 5, kind: output, shape index: {0}]
  %s6 = inlined_call_operand.hbm [shape: f32[8,128], index: 6, kind: output, shape index: {1}]
  %7 = xla_tuple %s5, %s6
  %s8 = sld [smem:[#allocation0]]
  $region50: #{tpu_custom_call.1} parent=0
    _
  %s10 = ssub.s32 1, %s8
  %s11 = scalar_select 0, %s10, %s8
  $region1: #{tpu_custom_call.1} parent=0
    #allocation2 [shape = 'u8[4096]{0}', space=vmem, size = 0x1000, scoped, tag = 'input window, operand 0, single buffered']
    #allocation3 [shape = 's32[1]{0}', space=sflag, size = 0x4, scoped, tag = 'scoped memory for tpu_custom_call.1']
    #allocation4 [shape = 's32[1]{0}', space=sflag, size = 0x4, scoped, tag = 'scoped memory for tpu_custom_call.1']
    #allocation5 [shape = 'u8[8192]{0}', space=vmem, size = 0x2000, scoped, tag = 'input window, operand 1, single buffered']
    #allocation6 [shape = 's32[1]{0}', space=sflag, size = 0x4, scoped, tag = 'scoped memory for tpu_custom_call.1']
    #allocation7 [shape = 'u8[32768]{0}', space=vmem, size = 0x8000, scoped, tag = 'input window, operand 3, single buffered']
    #allocation8 [shape = 'u8[2048]{0}', space=vmem, size = 0x800, scoped, tag = 'output window, operand 0, single buffered']
    #allocation9 [shape = 'u8[4096]{0}', space=vmem, size = 0x1000, scoped, tag = 'output window, operand 1, single buffered']
    #allocation10 [shape = 's32[1]{0}', space=sflag, size = 0x4, scoped, tag = 'scoped memory for tpu_custom_call.1']
    %12 = vsyncpa [#allocation3], 0
    %13 = vsyncpa [#allocation6], 0
    %14 = vsyncpa [#allocation4], 0
    %15 = vsyncpa [#allocation10], 0
    // Predicated region
    $region2: #{tpu_custom_call.1} parent=1 // pred_check
      _
    $region3: #{tpu_custom_call.1} parent=1 // pred_check_branch
      %17 = sbr.rel (0) target = $region5
    $region4: #{tpu_custom_call.1} parent=1 // pred_region
      %s19 = ssub.s32 128, 128
      %20 = vsyncadd [#allocation3], %s19
      %s22 = sshll.u32 [#allocation2], 4
      %s23 = int_to_ptr.vmem [resolvable:$true] %s22
      %25 = dma.hbm_to_vmem [thread:$0]  %s0, 128, %s23, [#allocation3]
    $region5: #{tpu_custom_call.1} parent=1 // pred_fallthru
      _
    // Predicated region
    $region6: #{tpu_custom_call.1} parent=1 // pred_check
      _
    $region7: #{tpu_custom_call.1} parent=1 // pred_check_branch
      %27 = sbr.rel (0) target = $region9
    $region8: #{tpu_custom_call.1} parent=1 // pred_region
      %s29 = ssub.s32 256, 256
      %30 = vsyncadd [#allocation6], %s29
      %s31 = sshll.u32 [#allocation5], 4
      %s32 = int_to_ptr.vmem [resolvable:$true] %s31
      %37 = dma.hbm_to_vmem [thread:$0]  %s1, 256, %s32, [#allocation6], 64, 64, 4
    $region9: #{tpu_custom_call.1} parent=1 // pred_fallthru
      _
    // Predicated region
    $region10: #{tpu_custom_call.1} parent=1 // pred_check
      _
    $region11: #{tpu_custom_call.1} parent=1 // pred_check_branch
      %39 = sbr.rel (0) target = $region13
    $region12: #{tpu_custom_call.1} parent=1 // pred_region
      _
    $region13: #{tpu_custom_call.1} parent=1 // pred_fallthru
      _
    // Predicated region
    $region14: #{tpu_custom_call.1} parent=1 // pred_check
      _
    $region15: #{tpu_custom_call.1} parent=1 // pred_check_branch
      %41 = sbr.rel (0) target = $region17
    $region16: #{tpu_custom_call.1} parent=1 // pred_region
      %s43 = ssub.s32 1024, 1024
      %44 = vsyncadd [#allocation6], %s43
      %s45 = sshll.u32 [#allocation7], 4
      %s46 = int_to_ptr.vmem [resolvable:$true] %s45
      %51 = dma.hbm_to_vmem [thread:$0]  %s3, 1024, %s46, [#allocation6], 64, 64, 4
    $region17: #{tpu_custom_call.1} parent=1 // pred_fallthru
      _
    // Predicated region
    $region18: #{tpu_custom_call.1} parent=1 // pred_check
      _
    $region19: #{tpu_custom_call.1} parent=1 // pred_check_branch
      %53 = sbr.rel (0) target = $region21
    $region20: #{tpu_custom_call.1} parent=1 // pred_region
      _
    $region21: #{tpu_custom_call.1} parent=1 // pred_fallthru
      _
    // Predicated region
    $region22: #{tpu_custom_call.1} parent=1 // pred_check
      _
    $region23: #{tpu_custom_call.1} parent=1 // pred_check_branch
      %55 = sbr.rel (0) target = $region25
    $region24: #{tpu_custom_call.1} parent=1 // pred_region
      %56 = dma.done [#allocation3], 128
    $region25: #{tpu_custom_call.1} parent=1 // pred_fallthru
      _
    // Predicated region
    $region26: #{tpu_custom_call.1} parent=1 // pred_check
      _
    $region27: #{tpu_custom_call.1} parent=1 // pred_check_branch
      %58 = sbr.rel (0) target = $region29
    $region28: #{tpu_custom_call.1} parent=1 // pred_region
      %59 = dma.done [#allocation6], 256
    $region29: #{tpu_custom_call.1} parent=1 // pred_fallthru
      _
    // Predicated region
    $region30: #{tpu_custom_call.1} parent=1 // pred_check
      _
    $region31: #{tpu_custom_call.1} parent=1 // pred_check_branch
      %61 = sbr.rel (0) target = $region33
    $region32: #{tpu_custom_call.1} parent=1 // pred_region
      %62 = dma.done [#allocation6], 1024
    $region33: #{tpu_custom_call.1} parent=1 // pred_fallthru
      _
    %v64 = vld [vmem:[#allocation2] sm:$0xff]
    %v65 = vpack.c.bf16 %v64, %v64
    %v66 = vld [vmem:[#allocation5] sm:$0xf]
    %v67 = vld [vmem:[#allocation5 + $0x4] sm:$0xf]
    %v68 = vld [vmem:[#allocation5 + $0x8] sm:$0xf]
    %v69 = vld [vmem:[#allocation5 + $0xc] sm:$0xf]
    %v74 = vunpack.c.l.b16 %v66
    %v75 = vunpack.c.l.b16 %v67
    %v76 = vunpack.c.l.b16 %v68
    %v77 = vunpack.c.l.b16 %v69
    %v78 = vpack.c.b16 %v75, %v74
    %v79 = vpack.c.b16 %v77, %v76
    %vm82 = vcmask 261120
    %v84 = vsel %vm82, %v65, 0
    %86 = vmatprep.subr.bf16.mxu0 0
    %87 = vmatpush1.bf16.msra.mxu0 %v78
    %88 = vmatprep.subr.bf16.mxu0 0
    %89 = vmatpush1.bf16.msra.mxu0 %v79
    %90 = vmatprep.subr.bf16.mxu0 0
    %91 = vmatpush1.bf16.msra.mxu0 0
    %92 = vmatprep.subr.bf16.mxu0 0
    %93 = vmatpush1.bf16.msra.mxu0 0
    %94 = vmatprep.subr.bf16.mxu0 0
    %95 = vmatpush1.bf16.msra.mxu0 0
    %96 = vmatprep.subr.bf16.mxu0 0
    %97 = vmatpush1.bf16.msra.mxu0 0
    %98 = vmatprep.subr.bf16.mxu0 0
    %99 = vmatpush1.bf16.msra.mxu0 0
    %100 = vmatprep.subr.bf16.mxu0 0
    %101 = vmatpush1.bf16.msra.mxu0 0
    %102 = vmatprep.subr.bf16.mxu0 0
    %103 = vmatpush1.bf16.msra.mxu0 0
    %104 = vmatprep.subr.bf16.mxu0 0
    %105 = vmatpush1.bf16.msra.mxu0 0
    %106 = vmatprep.subr.bf16.mxu0 0
    %107 = vmatpush1.bf16.msra.mxu0 0
    %108 = vmatprep.subr.bf16.mxu0 0
    %109 = vmatpush1.bf16.msra.mxu0 0
    %110 = vmatprep.subr.bf16.mxu0 0
    %111 = vmatpush1.bf16.msra.mxu0 0
    %112 = vmatprep.subr.bf16.mxu0 0
    %113 = vmatpush1.bf16.msra.mxu0 0
    %114 = vmatprep.subr.bf16.mxu0 0
    %115 = vmatpush1.bf16.msra.mxu0 0
    %116 = vmatprep.subr.bf16.mxu0 0
    %117 = vmatpush1.bf16.msra.mxu0 0
    %118 = vmatprep.mubr.bf16.mxu0 0
    %119 = vmatmul.mubr.bf16.gmra.mrb[0].mxu0 %v84
    %v120 = vpop.f32.mrb[0].mxu0
    %v121 = vadd.f32 0.0, %v120
    %v122 = vpop.f32.mrb[0].mxu0
    %v123 = vpop.f32.mrb[0].mxu0
    %v124 = vpop.f32.mrb[0].mxu0
    %125 = vdwg.mxu0
    %v126 = vld [vmem:[%s2] sm:$0x1]
    %v128 = vlaneseq
    %v129 = vshrl.u32 %v128, 7
    %v130 = vsub.s32 0, %v129
    %v131 = vrot.slane %v126, %v130
    %vm133 = vcmp.ge.f32.partialorder %v121, %v131
    %v134 = vsel %vm133, 1, 0
    %v135 = vcvt.s32.f32 %v134
    %v136 = vpack.c.bf16 %v135, %v135
    %137 = vst [vmem:[#allocation8] sm:$0xf] %v136
    %v138 = vld [vmem:[#allocation7] sm:$0xf]
    %v139 = vld [vmem:[#allocation7 + $0x4] sm:$0xf]
    %v140 = vld [vmem:[#allocation7 + $0x8] sm:$0xf]
    %v141 = vld [vmem:[#allocation7 + $0xc] sm:$0xf]
    %v142 = vld [vmem:[#allocation7 + $0x10] sm:$0xf]
    %v143 = vld [vmem:[#allocation7 + $0x14] sm:$0xf]
    %v144 = vld [vmem:[#allocation7 + $0x18] sm:$0xf]
    %v145 = vld [vmem:[#allocation7 + $0x1c] sm:$0xf]
    %v146 = vld [vmem:[#allocation7 + $0x20] sm:$0xf]
    %v147 = vld [vmem:[#allocation7 + $0x24] sm:$0xf]
    %v148 = vld [vmem:[#allocation7 + $0x28] sm:$0xf]
    %v149 = vld [vmem:[#allocation7 + $0x2c] sm:$0xf]
    %v150 = vld [vmem:[#allocation7 + $0x30] sm:$0xf]
    %v151 = vld [vmem:[#allocation7 + $0x34] sm:$0xf]
    %v152 = vld [vmem:[#allocation7 + $0x38] sm:$0xf]
    %v153 = vld [vmem:[#allocation7 + $0x3c] sm:$0xf]
    %v154 = vld [vmem:[%s4] sm:$0x1]
    %v156 = vlaneseq
    %v157 = vshrl.u32 %v156, 7
    %v158 = vsub.s32 0, %v157
    %v159 = vrot.slane %v154, %v158
    %v177 = vunpack.c.l.b16 %v138
    %v178 = vunpack.c.l.b16 %v139
    %v179 = vunpack.c.l.b16 %v140
    %v180 = vunpack.c.l.b16 %v141
    %v181 = vunpack.c.l.b16 %v142
    %v182 = vunpack.c.l.b16 %v143
    %v183 = vunpack.c.l.b16 %v144
    %v184 = vunpack.c.l.b16 %v145
    %v185 = vunpack.c.l.b16 %v146
    %v186 = vunpack.c.l.b16 %v147
    %v187 = vunpack.c.l.b16 %v148
    %v188 = vunpack.c.l.b16 %v149
    %v189 = vunpack.c.l.b16 %v150
    %v190 = vunpack.c.l.b16 %v151
    %v191 = vunpack.c.l.b16 %v152
    %v192 = vunpack.c.l.b16 %v153
    %v193 = vpack.c.b16 %v178, %v177
    %v194 = vpack.c.b16 %v180, %v179
    %v195 = vpack.c.b16 %v182, %v181
    %v196 = vpack.c.b16 %v184, %v183
    %v197 = vpack.c.b16 %v186, %v185
    %v198 = vpack.c.b16 %v188, %v187
    %v199 = vpack.c.b16 %v190, %v189
    %v200 = vpack.c.b16 %v192, %v191
    %209 = vmatprep.subr.bf16.mxu0 0
    %210 = vmatpush1.bf16.msra.mxu0 %v193
    %211 = vmatprep.subr.bf16.mxu0 0
    %212 = vmatpush1.bf16.msra.mxu0 %v194
    %213 = vmatprep.subr.bf16.mxu0 0
    %214 = vmatpush1.bf16.msra.mxu0 %v195
    %215 = vmatprep.subr.bf16.mxu0 0
    %216 = vmatpush1.bf16.msra.mxu0 %v196
    %217 = vmatprep.subr.bf16.mxu0 0
    %218 = vmatpush1.bf16.msra.mxu0 %v197
    %219 = vmatprep.subr.bf16.mxu0 0
    %220 = vmatpush1.bf16.msra.mxu0 %v198
    %221 = vmatprep.subr.bf16.mxu0 0
    %222 = vmatpush1.bf16.msra.mxu0 %v199
    %223 = vmatprep.subr.bf16.mxu0 0
    %224 = vmatpush1.bf16.msra.mxu0 %v200
    %225 = vmatprep.subr.bf16.mxu0 0
    %226 = vmatpush1.bf16.msra.mxu0 0
    %227 = vmatprep.subr.bf16.mxu0 0
    %228 = vmatpush1.bf16.msra.mxu0 0
    %229 = vmatprep.subr.bf16.mxu0 0
    %230 = vmatpush1.bf16.msra.mxu0 0
    %231 = vmatprep.subr.bf16.mxu0 0
    %232 = vmatpush1.bf16.msra.mxu0 0
    %233 = vmatprep.subr.bf16.mxu0 0
    %234 = vmatpush1.bf16.msra.mxu0 0
    %235 = vmatprep.subr.bf16.mxu0 0
    %236 = vmatpush1.bf16.msra.mxu0 0
    %237 = vmatprep.subr.bf16.mxu0 0
    %238 = vmatpush1.bf16.msra.mxu0 0
    %239 = vmatprep.subr.bf16.mxu0 0
    %240 = vmatpush1.bf16.msra.mxu0 0
    %241 = vmatprep.mubr.bf16.mxu0 0
    %242 = vmatmul.mubr.bf16.gmra.mrb[0].mxu0 %v136
    %v243 = vpop.f32.mrb[0].mxu0
    %v244 = vadd.f32 %v159, %v243
    %v245 = vpop.f32.mrb[0].mxu0
    %v246 = vpop.f32.mrb[0].mxu0
    %v247 = vpop.f32.mrb[0].mxu0
    %248 = vdwg.mxu0
    %249 = vst [vmem:[#allocation9] sm:$0xff] %v244
    // Predicated region
    $region34: #{tpu_custom_call.1} parent=1 // pred_check
      _
    $region35: #{tpu_custom_call.1} parent=1 // pred_check_branch
      %251 = sbr.rel (0) target = $region37
    $region36: #{tpu_custom_call.1} parent=1 // pred_region
      %s253 = ssub.s32 64, 64
      %254 = vsyncadd [#allocation4], %s253
      %s256 = sshll.u32 [#allocation8], 4
      %s257 = int_to_ptr.vmem [resolvable:$true] %s256
      %259 = dma.vmem_to_hbm [thread:$0]  %s257, 64, %s5, [#allocation4]
    $region37: #{tpu_custom_call.1} parent=1 // pred_fallthru
      _
    // Predicated region
    $region38: #{tpu_custom_call.1} parent=1 // pred_check
      _
    $region39: #{tpu_custom_call.1} parent=1 // pred_check_branch
      %261 = sbr.rel (0) target = $region41
    $region40: #{tpu_custom_call.1} parent=1 // pred_region
      %s263 = ssub.s32 128, 128
      %264 = vsyncadd [#allocation10], %s263
      %s266 = sshll.u32 [#allocation9], 4
      %s267 = int_to_ptr.vmem [resolvable:$true] %s266
      %269 = dma.vmem_to_hbm [thread:$0]  %s267, 128, %s6, [#allocation10]
    $region41: #{tpu_custom_call.1} parent=1 // pred_fallthru
      _
    // Predicated region
    $region42: #{tpu_custom_call.1} parent=1 // pred_check
      _
    $region43: #{tpu_custom_call.1} parent=1 // pred_check_branch
      %271 = sbr.rel (0) target = $region45
    $region44: #{tpu_custom_call.1} parent=1 // pred_region
      %272 = dma.done [#allocation4], 64
    $region45: #{tpu_custom_call.1} parent=1 // pred_fallthru
      _
    // Predicated region
    $region46: #{tpu_custom_call.1} parent=1 // pred_check
      _
    $region47: #{tpu_custom_call.1} parent=1 // pred_check_branch
      %274 = sbr.rel (0) target = $region49
    $region48: #{tpu_custom_call.1} parent=1 // pred_region
      %275 = dma.done [#allocation10], 128
    $region49: #{tpu_custom_call.1} parent=1 // pred_fallthru
      _
    %276 = vsyncpa [#allocation3], 1
    %277 = vsyncpa [#allocation6], 1
    %278 = vsyncpa [#allocation4], 1
    %279 = vsyncpa [#allocation10], 1

</llo_original>
